<compile_context>
chip_gen: v5e
topology: v5e:2x2
jax: 0.10.0
libtpu: 0.0.40
codegen_flags: <defaults>
</compile_context>

<pallas_src>
import jax
import jax.numpy as jnp
from jax.experimental import pallas as pl
from jax.experimental.pallas import tpu as pltpu


def _nrelu_kernel(x_ref, o_ref):
    # -relu(-x) == min(x, 0); single VPU vmin against a scalar per vreg.
    x = x_ref[...]
    o_ref[...] = jnp.minimum(x, jnp.array(0, dtype=x.dtype))


_WIDTH_CANDIDATES = (4096, 2048, 1024, 512, 256, 128)  # lane-dense last dims
_BLOCK_BYTES = 4 << 20        # ~4 MiB/block -> 16 MiB double-buffered (in+out)
_VMEM_LIMIT_BYTES = 32 << 20  # admit that footprint on v5e/v6e/v7x with headroom
_MIN_PALLAS_BYTES = 1 << 20   # below this, a standalone launch is pure overhead


def nrelu(x: jax.Array, *, min_pallas_bytes: int = _MIN_PALLAS_BYTES) -> jax.Array:
    """Pallas TPU implementation of NRelu.forward (elementwise min(x, 0))."""
    orig_shape = x.shape
    dtype = x.dtype
    total = x.size
    if total == 0:
        return x

    itemsize = jnp.dtype(dtype).itemsize
    total_bytes = total * itemsize

    # Largest lane-dense width dividing the flat size -> no pad / slice copies.
    width = None
    for w in _WIDTH_CANDIDATES:
        if total % w == 0:
            width = w
            break

    if width is None or total_bytes < min_pallas_bytes:
        # Small or ragged input: plain fused elementwise min (1x read + 1x write)
        # beats any standalone-kernel plumbing for a pure HBM-streaming op.
        return jnp.minimum(x, jnp.array(0, dtype=dtype))

    rows = total // width
    # Packed-sublane multiple: 8 for f32, 16 for bf16, 32 for int8.
    sublane = max(8, 32 // max(1, itemsize))
    target_rows = max(sublane, _BLOCK_BYTES // (width * itemsize))
    target_rows = (target_rows // sublane) * sublane

    if rows <= target_rows:
        # Single block spanning the full row dim (exempt from (8,128) rule).
        block_rows = rows
    else:
        # Multi-block grid; block_rows is a sublane multiple, width a multiple
        # of 128, so a partial last block is legal and masked by Pallas.
        block_rows = target_rows

    slab = x.reshape(rows, width)
    grid = (pl.cdiv(rows, block_rows),)

    out = pl.pallas_call(
        _nrelu_kernel,
        out_shape=jax.ShapeDtypeStruct((rows, width), dtype),
        grid_spec=pltpu.PrefetchScalarGridSpec(
            num_scalar_prefetch=0,
            grid=grid,
            in_specs=[pl.BlockSpec((block_rows, width), lambda i: (i, 0))],
            out_specs=pl.BlockSpec((block_rows, width), lambda i: (i, 0)),
        ),
        compiler_params=pltpu.CompilerParams(
            dimension_semantics=("parallel",),
            vmem_limit_bytes=_VMEM_LIMIT_BYTES,
        ),
        input_output_aliases={0: 0},
    )(slab)

    return out.reshape(orig_shape)


if __name__ == "__main__":
    key = jax.random.PRNGKey(0)

    # Shapes consistent with the module's documented (N, C, H, W) input.
    shapes = [
        (2, 4, 16, 16),     # small, divisible by 128 -> fast fallback by default
        (2, 3, 5, 7),       # ragged total -> fallback path
        (3, 16, 64, 128),   # ~1.5 MiB -> single-block Pallas path
        (4, 16, 144, 128),  # ~4.5 MiB -> multi-block grid + partial last block
    ]

    ok = True
    for i, shape in enumerate(shapes):
        k = jax.random.fold_in(key, i)
        x = jax.random.normal(k, shape, dtype=jnp.float32)
        ref = -jax.nn.relu(-x)

        # Default dispatch (may route small/ragged inputs to the XLA fallback).
        y = jax.block_until_ready(nrelu(x))
        ok &= y.shape == x.shape and y.dtype == x.dtype
        ok &= bool(jnp.allclose(y, ref))

        # Force the Pallas path (where a lane-dense width exists) so the
        # kernel itself is exercised even for small divisible shapes.
        y2 = jax.block_until_ready(nrelu(x, min_pallas_bytes=0))
        ok &= y2.shape == x.shape and y2.dtype == x.dtype
        ok &= bool(jnp.allclose(y2, ref))

    assert ok, "mismatch vs reference"
    print("KERNEL_OK")
</pallas_src>

<mosaic_0001>
module attributes {stable_mosaic.version = 11 : i64} {
  func.func @_nrelu_kernel(%arg0: i32, %arg1: memref<1x2048xf32, #tpu.memory_space<vmem>>, %arg2: memref<1x2048xf32, #tpu.memory_space<vmem>>) attributes {dimension_semantics = [#tpu.dimension_semantics<parallel>], iteration_bounds = array<i64: 1>, scalar_prefetch = 0 : i64, scratch_operands = 0 : i64, tpu.core_type = #tpu.core_type<tc>, window_params = [{transform_indices = @transform_0, window_bounds = array<i64: 1, 2048>}, {transform_indices = @transform_1, window_bounds = array<i64: 1, 2048>}]} {
    %c0 = arith.constant 0 : index
    %c0_0 = arith.constant 0 : index
    %0 = vector.load %arg1[%c0, %c0_0] : memref<1x2048xf32, #tpu.memory_space<vmem>>, vector<1x2048xf32>
    %cst = arith.constant 0.000000e+00 : f32
    %1 = vector.broadcast %cst : f32 to vector<1x2048xf32>
    %2 = arith.minimumf %0, %1 : vector<1x2048xf32>
    %c0_1 = arith.constant 0 : index
    %c0_2 = arith.constant 0 : index
    %3 = vector.load %arg2[%c0_1, %c0_2] : memref<1x2048xf32, #tpu.memory_space<vmem>>, vector<1x2048xf32>
    tpu.vector_store %arg2[%c0_1, %c0_2], %2 {strides = array<i32>} : memref<1x2048xf32, #tpu.memory_space<vmem>>, vector<1x2048xf32>,
    return
  }
  func.func @transform_0(%arg0: i32) -> (i32, i32) {
    %c0_i32 = arith.constant 0 : i32
    %c0_i32_0 = arith.constant 0 : i32
    return %arg0, %c0_i32 : i32, i32
  }
  func.func @transform_1(%arg0: i32) -> (i32, i32) {
    %c0_i32 = arith.constant 0 : i32
    %c0_i32_0 = arith.constant 0 : i32
    return %arg0, %c0_i32 : i32, i32
  }
}

</mosaic_0001>

<llo_original>
// kernel: tpu_custom_call.1
$region0: #{tpu_custom_call.1}
  #allocation0 [shape = 'u32[]', space=smem, size = 0x4, offset = 0x4, fixed_abs, tag = 'smem constant byte address 0x4 - core index']
  #allocation1 [shape = 'u32[72,128]{1,0:T(1,128)}', space=vmem, size = 0x9000, scoped, tag = 'internal scratch']
  %s0 = inlined_call_operand.hbm [shape: f32[1,2048], index: 0, kind: input, shape index: {}, may-alias: {0,1}]
  %s1 = inlined_call_operand.hbm [shape: f32[1,2048], index: 1, kind: output, shape index: {}, may-alias: {0,1}]
  %s2 = sld [smem:[#allocation0]]
  $region18: #{tpu_custom_call.1} parent=0
    _
  %s4 = ssub.s32 1, %s2
  %s5 = scalar_select 0, %s4, %s2
  $region1: #{tpu_custom_call.1} parent=0
    #allocation2 [shape = 'u8[8192]{0}', space=vmem, size = 0x2000, scoped, tag = 'input window, operand 0, single buffered']
    #allocation3 [shape = 's32[1]{0}', space=sflag, size = 0x4, scoped, tag = 'scoped memory for tpu_custom_call.1']
    #allocation4 [shape = 's32[1]{0}', space=sflag, size = 0x4, scoped, tag = 'scoped memory for tpu_custom_call.1']
    #allocation5 [shape = 'u8[8192]{0}', space=vmem, size = 0x2000, scoped, tag = 'output window, operand 0, single buffered']
    %6 = vsyncpa [#allocation3], 0
    %7 = vsyncpa [#allocation4], 0
    // Predicated region
    $region2: #{tpu_custom_call.1} parent=1 // pred_check
      _
    $region3: #{tpu_custom_call.1} parent=1 // pred_check_branch
      %9 = sbr.rel (0) target = $region5
    $region4: #{tpu_custom_call.1} parent=1 // pred_region
      %11 = vsyncadd [#allocation3], 0
      %s13 = sshll.u32 %s0, 4
      %s14 = int_to_ptr.hbm [resolvable:$true] %s13
      %s15 = sshll.u32 [#allocation2], 4
      %s16 = int_to_ptr.vmem [resolvable:$true] %s15
      %18 = dma.hbm_to_vmem [thread:$0]  %s14, 256, %s16, [#allocation3]
    $region5: #{tpu_custom_call.1} parent=1 // pred_fallthru
      _
    // Predicated region
    $region6: #{tpu_custom_call.1} parent=1 // pred_check
      _
    $region7: #{tpu_custom_call.1} parent=1 // pred_check_branch
      %20 = sbr.rel (0) target = $region9
    $region8: #{tpu_custom_call.1} parent=1 // pred_region
      %22 = dma.done [#allocation3], 256
    $region9: #{tpu_custom_call.1} parent=1 // pred_fallthru
      _
    %v23 = vld [vmem:[#allocation2] sm:$0xff]
    %v24 = vld [vmem:[#allocation2 + $0x8] sm:$0xff]
    %v25 = vmin.f32 %v23, 0.0
    %v26 = vmin.f32 %v24, 0.0
    %27 = vst [vmem:[#allocation5] sm:$0xff] %v25
    %28 = vst [vmem:[#allocation5 + $0x8] sm:$0xff] %v26
    // Predicated region
    $region10: #{tpu_custom_call.1} parent=1 // pred_check
      _
    $region11: #{tpu_custom_call.1} parent=1 // pred_check_branch
      %30 = sbr.rel (0) target = $region13
    $region12: #{tpu_custom_call.1} parent=1 // pred_region
      %32 = vsyncadd [#allocation4], 0
      %s34 = sshll.u32 [#allocation5], 4
      %s35 = int_to_ptr.vmem [resolvable:$true] %s34
      %s36 = sshll.u32 %s1, 4
      %s37 = int_to_ptr.hbm [resolvable:$true] %s36
      %39 = dma.vmem_to_hbm [thread:$0]  %s35, 256, %s37, [#allocation4]
    $region13: #{tpu_custom_call.1} parent=1 // pred_fallthru
      _
    // Predicated region
    $region14: #{tpu_custom_call.1} parent=1 // pred_check
      _
    $region15: #{tpu_custom_call.1} parent=1 // pred_check_branch
      %41 = sbr.rel (0) target = $region17
    $region16: #{tpu_custom_call.1} parent=1 // pred_region
      %43 = dma.done [#allocation4], 256
    $region17: #{tpu_custom_call.1} parent=1 // pred_fallthru
      _
    %44 = vsyncpa [#allocation3], 1
    %45 = vsyncpa [#allocation4], 1

</llo_original>
